<compile_context>
chip_gen: v7x
topology: tpu7x:2x2x1
jax: 0.10.0
libtpu: 0.0.40
codegen_flags: <defaults>
</compile_context>

<pallas_src>
import functools

import jax
import jax.numpy as jnp
from jax.experimental import pallas as pl
from jax.experimental.pallas import tpu as pltpu


def head_kernel(x_ref, wq_ref, wk_ref, wv_ref, o_ref, k_sc, v_sc,
                *, q_tile, compute_dtype):
    # x_ref : (1, T, C)   full sequence for this batch element (bf16)
    # w*_ref: (C, d_k)    bf16 weights (Wq already carries the C**-0.5 scale)
    # o_ref : (1, Tq, d_k) output tile (f32)
    # k_sc/v_sc : (T, d_k) bf16 VMEM scratch holding the hoisted K/V projections
    t = pl.program_id(1)

    # --- Hoisted K/V projections: once per batch element (first query tile). ---
    @pl.when(t == 0)
    def _():
        xkv = x_ref[0]                                                 # (T, C)
        k_sc[...] = jnp.dot(xkv, wk_ref[...],
                            preferred_element_type=jnp.float32).astype(k_sc.dtype)
        v_sc[...] = jnp.dot(xkv, wv_ref[...],
                            preferred_element_type=jnp.float32).astype(v_sc.dtype)

    # --- Query tile: slice rows from the resident sequence block. ---
    start = pl.multiple_of(t * q_tile, q_tile)
    xq = x_ref[0, pl.ds(start, q_tile), :]                             # (Tq, C)

    # q projection (scale folded into Wq in the wrapper): bf16 MXU, f32 acc.
    q = jnp.dot(xq, wq_ref[...], preferred_element_type=jnp.float32)   # (Tq, d_k)

    # Scores: contract last dims directly (td,sd->ts) — no explicit transpose.
    wei = jax.lax.dot_general(
        q.astype(compute_dtype), k_sc[...],
        dimension_numbers=(((1,), (1,)), ((), ())),
        preferred_element_type=jnp.float32)                            # (Tq, T)

    # Softmax in f32; reciprocal goes to the EUP slot.
    m = jnp.max(wei, axis=-1, keepdims=True)
    e = jnp.exp(wei - m)
    inv = pl.reciprocal(jnp.sum(e, axis=-1, keepdims=True), approx=True)
    p = (e * inv).astype(compute_dtype)                                # (Tq, T)

    out = jnp.dot(p, v_sc[...], preferred_element_type=jnp.float32)    # (Tq, d_k)
    o_ref[0] = out.astype(o_ref.dtype)


def _pick_q_tile(T, max_tile=512):
    """Largest query tile that divides T, is a multiple of 8, and <= max_tile."""
    if T <= max_tile:
        return T
    for tq in (1024, 512, 256, 128, 64, 32, 16, 8):
        if tq <= max_tile and T % tq == 0:
            return tq
    return T


def head_attention(x, wq, wk, wv, *, compute_dtype=jnp.bfloat16,
                   out_dtype=jnp.float32, max_q_tile=512):
    """Pallas TPU forward of `Head` (self-attention path, no mask, no dropout).

    x : (B, T, C) activations
    wq/wk/wv : (C, d_k) weights stored (in, out) — equivalent to torch
               Linear(bias=False) computing x @ W.T with W of shape (d_k, C).
    """
    B, T, C = x.shape
    d_k = wq.shape[1]
    assert wq.shape == wk.shape == wv.shape == (C, d_k)

    # NOTE: module scales by n_embd (C)**-0.5, not d_k**-0.5 — keep parity.
    scale = float(C) ** (-0.5)
    Tq = _pick_q_tile(T, max_q_tile)
    nq = T // Tq

    # Single wrapper-side cast pass: bf16 activations & weights; scale folded
    # into the Wq cast (no new XLA op vs. the cast that already existed).
    x_c = x.astype(compute_dtype)
    wq_c = (wq * scale).astype(compute_dtype)
    wk_c = wk.astype(compute_dtype)
    wv_c = wv.astype(compute_dtype)

    kernel = functools.partial(head_kernel, q_tile=Tq,
                               compute_dtype=compute_dtype)

    # Size the scoped VMEM limit to the real footprint + headroom.
    isz = jnp.dtype(compute_dtype).itemsize
    footprint = (
        2 * T * C * isz            # xkv block (double-buffered)
        + 2 * 3 * C * d_k * isz    # weights (double-buffered)
        + 2 * Tq * d_k * 4         # output tile (double-buffered)
        + 2 * T * d_k * isz        # hoisted K/V scratch
        + 3 * Tq * T * 4           # f32 score / exp intermediates
        + (Tq + 2 * T) * d_k * 4   # f32 q/k/v intermediates
    )
    vmem_limit = int(min(max(2 * footprint, 32 * 1024 * 1024),
                         100 * 1024 * 1024))

    weight_spec = lambda: pl.BlockSpec((C, d_k), lambda b, t: (0, 0))
    in_specs = [
        pl.BlockSpec((1, T, C), lambda b, t: (b, 0, 0)),   # full sequence / batch
        weight_spec(), weight_spec(), weight_spec(),       # Wq, Wk, Wv
    ]
    out_specs = pl.BlockSpec((1, Tq, d_k), lambda b, t: (b, t, 0))

    return pl.pallas_call(
        kernel,
        out_shape=jax.ShapeDtypeStruct((B, T, d_k), out_dtype),
        grid_spec=pltpu.PrefetchScalarGridSpec(
            num_scalar_prefetch=0,
            grid=(B, nq),
            in_specs=in_specs,
            out_specs=out_specs,
            scratch_shapes=[pltpu.VMEM((T, d_k), compute_dtype),   # K
                            pltpu.VMEM((T, d_k), compute_dtype)],  # V
        ),
        compiler_params=pltpu.CompilerParams(
            dimension_semantics=("parallel", "arbitrary"),
            vmem_limit_bytes=vmem_limit),
    )(x_c, wq_c, wk_c, wv_c)


def head_ref(x, wq, wk, wv):
    """Pure-JAX f32 reference matching the PyTorch module (dropout=identity)."""
    B, T, C = x.shape
    q = x @ wq
    k = x @ wk
    v = x @ wv
    wei = jnp.einsum("btd,bsd->bts", q, k) * (C ** (-0.5))
    wei = jax.nn.softmax(wei, axis=-1)
    return jnp.einsum("bts,bsd->btd", wei, v)


if __name__ == "__main__":
    # Small shapes consistent with the module: batch=2, seq=8, n_embd=32, d_k=8.
    B, T, C, d_k = 2, 8, 32, 8

    key = jax.random.PRNGKey(0)
    k1, k2, k3, k4 = jax.random.split(key, 4)
    s = 0.1
    wq = jax.random.normal(k1, (C, d_k), jnp.float32) * s
    wk = jax.random.normal(k2, (C, d_k), jnp.float32) * s
    wv = jax.random.normal(k3, (C, d_k), jnp.float32) * s
    x = jax.random.normal(k4, (B, T, C), jnp.float32)

    out = head_attention(x, wq, wk, wv)
    out = jax.block_until_ready(out)

    ref = head_ref(x, wq, wk, wv)
    assert out.shape == ref.shape, f"shape mismatch {out.shape} vs {ref.shape}"
    # bf16 MXU operands + approx reciprocal -> loosened tolerance vs f32 ref.
    assert jnp.allclose(out, ref, atol=2e-2, rtol=2e-2), (
        f"mismatch vs reference, max abs err = {jnp.max(jnp.abs(out - ref))}")

    print("KERNEL_OK")
</pallas_src>

<mosaic_0001>
module attributes {stable_mosaic.version = 11 : i64} {
  func.func @head_kernel(%arg0: i32, %arg1: i32, %arg2: memref<1x8x32xbf16, #tpu.memory_space<vmem>>, %arg3: memref<32x8xbf16, #tpu.memory_space<vmem>>, %arg4: memref<32x8xbf16, #tpu.memory_space<vmem>>, %arg5: memref<32x8xbf16, #tpu.memory_space<vmem>>, %arg6: memref<1x8x8xf32, #tpu.memory_space<vmem>>, %arg7: memref<8x8xbf16, #tpu.memory_space<vmem>>, %arg8: memref<8x8xbf16, #tpu.memory_space<vmem>>) attributes {dimension_semantics = [#tpu.dimension_semantics<parallel>, #tpu.dimension_semantics<arbitrary>], iteration_bounds = array<i64: 2, 1>, scalar_prefetch = 0 : i64, scratch_operands = 2 : i64, tpu.core_type = #tpu.core_type<tc>, window_params = [{transform_indices = @transform_0, window_bounds = array<i64: 1, 8, 32>}, {pipeline_mode = #tpu.pipeline_mode<synchronous>, transform_indices = @transform_1, window_bounds = array<i64: 32, 8>}, {pipeline_mode = #tpu.pipeline_mode<synchronous>, transform_indices = @transform_2, window_bounds = array<i64: 32, 8>}, {pipeline_mode = #tpu.pipeline_mode<synchronous>, transform_indices = @transform_3, window_bounds = array<i64: 32, 8>}, {transform_indices = @transform_4, window_bounds = array<i64: 1, 8, 8>}]} {
    %c0_i32 = arith.constant 0 : i32
    %0 = arith.cmpi eq, %arg1, %c0_i32 : i32
    %1 = arith.extui %0 : i1 to i32
    %c0_i32_0 = arith.constant 0 : i32
    %2 = arith.cmpi ne, %1, %c0_i32_0 : i32
    scf.if %2 {
      %c0_15 = arith.constant 0 : index
      %c0_16 = arith.constant 0 : index
      %c0_17 = arith.constant 0 : index
      %29 = vector.load %arg2[%c0_15, %c0_16, %c0_17] : memref<1x8x32xbf16, #tpu.memory_space<vmem>>, vector<1x8x32xbf16>
      %30 = vector.shape_cast %29 : vector<1x8x32xbf16> to vector<8x32xbf16>
      %c0_18 = arith.constant 0 : index
      %c0_19 = arith.constant 0 : index
      %31 = vector.load %arg4[%c0_18, %c0_19] : memref<32x8xbf16, #tpu.memory_space<vmem>>, vector<32x8xbf16>
      %cst_20 = arith.constant dense<0.000000e+00> : vector<8x8xf32>
      %32 = tpu.matmul %30, %31, %cst_20 {dimension_numbers = #tpu.dot_dimension_numbers<[1], [0], [0], [1], [0, 0, 1, 1], [], []>} : vector<8x32xbf16>, vector<32x8xbf16>, vector<8x8xf32> -> vector<8x8xf32>
      %33 = arith.truncf %32 : vector<8x8xf32> to vector<8x8xbf16>
      %c0_21 = arith.constant 0 : index
      %c0_22 = arith.constant 0 : index
      %34 = vector.load %arg7[%c0_21, %c0_22] : memref<8x8xbf16, #tpu.memory_space<vmem>>, vector<8x8xbf16>
      tpu.vector_store %arg7[%c0_21, %c0_22], %33 {strides = array<i32>} : memref<8x8xbf16, #tpu.memory_space<vmem>>, vector<8x8xbf16>,
      %c0_23 = arith.constant 0 : index
      %c0_24 = arith.constant 0 : index
      %35 = vector.load %arg5[%c0_23, %c0_24] : memref<32x8xbf16, #tpu.memory_space<vmem>>, vector<32x8xbf16>
      %cst_25 = arith.constant dense<0.000000e+00> : vector<8x8xf32>
      %36 = tpu.matmul %30, %35, %cst_25 {dimension_numbers = #tpu.dot_dimension_numbers<[1], [0], [0], [1], [0, 0, 1, 1], [], []>} : vector<8x32xbf16>, vector<32x8xbf16>, vector<8x8xf32> -> vector<8x8xf32>
      %37 = arith.truncf %36 : vector<8x8xf32> to vector<8x8xbf16>
      %c0_26 = arith.constant 0 : index
      %c0_27 = arith.constant 0 : index
      %38 = vector.load %arg8[%c0_26, %c0_27] : memref<8x8xbf16, #tpu.memory_space<vmem>>, vector<8x8xbf16>
      tpu.vector_store %arg8[%c0_26, %c0_27], %37 {strides = array<i32>} : memref<8x8xbf16, #tpu.memory_space<vmem>>, vector<8x8xbf16>,
    } else {
    }
    %c8_i32 = arith.constant 8 : i32
    %3 = arith.muli %arg1, %c8_i32 : i32
    %4 = tpu.assume_multiple %3, 8 : i32
    %c0 = arith.constant 0 : index
    %5 = arith.index_cast %4 : i32 to index
    %c0_1 = arith.constant 0 : index
    %6 = vector.load %arg2[%c0, %5, %c0_1] : memref<1x8x32xbf16, #tpu.memory_space<vmem>>, vector<1x8x32xbf16>
    %7 = vector.shape_cast %6 : vector<1x8x32xbf16> to vector<8x32xbf16>
    %c0_2 = arith.constant 0 : index
    %c0_3 = arith.constant 0 : index
    %8 = vector.load %arg3[%c0_2, %c0_3] : memref<32x8xbf16, #tpu.memory_space<vmem>>, vector<32x8xbf16>
    %cst = arith.constant dense<0.000000e+00> : vector<8x8xf32>
    %9 = tpu.matmul %7, %8, %cst {dimension_numbers = #tpu.dot_dimension_numbers<[1], [0], [0], [1], [0, 0, 1, 1], [], []>} : vector<8x32xbf16>, vector<32x8xbf16>, vector<8x8xf32> -> vector<8x8xf32>
    %10 = arith.truncf %9 : vector<8x8xf32> to vector<8x8xbf16>
    %c0_4 = arith.constant 0 : index
    %c0_5 = arith.constant 0 : index
    %11 = vector.load %arg7[%c0_4, %c0_5] : memref<8x8xbf16, #tpu.memory_space<vmem>>, vector<8x8xbf16>
    %cst_6 = arith.constant dense<0.000000e+00> : vector<8x8xf32>
    %12 = tpu.matmul %10, %11, %cst_6 {dimension_numbers = #tpu.dot_dimension_numbers<[1], [1], [0], [0], [0, 0, 1, 0], [], []>} : vector<8x8xbf16>, vector<8x8xbf16>, vector<8x8xf32> -> vector<8x8xf32>
    %cst_7 = arith.constant dense<0xFF800000> : vector<8xf32>
    %13 = vector.multi_reduction <maximumf>, %12, %cst_7 [1] : vector<8x8xf32> to vector<8xf32>
    %14 = vector.shape_cast %13 : vector<8xf32> to vector<8x1xf32>
    %15 = vector.broadcast %14 : vector<8x1xf32> to vector<8x8xf32>
    %16 = arith.subf %12, %15 : vector<8x8xf32>
    %17 = math.exp %16 : vector<8x8xf32>
    %cst_8 = arith.constant dense<0.000000e+00> : vector<8xf32>
    %18 = vector.multi_reduction <add>, %17, %cst_8 [1] : vector<8x8xf32> to vector<8xf32>
    %19 = vector.shape_cast %18 : vector<8xf32> to vector<8x1xf32>
    %20 = tpu.reciprocal %19 {approx = true} : vector<8x1xf32> -> vector<8x1xf32>
    %21 = vector.broadcast %20 : vector<8x1xf32> to vector<8x8xf32>
    %22 = arith.mulf %17, %21 : vector<8x8xf32>
    %23 = arith.truncf %22 : vector<8x8xf32> to vector<8x8xbf16>
    %c0_9 = arith.constant 0 : index
    %c0_10 = arith.constant 0 : index
    %24 = vector.load %arg8[%c0_9, %c0_10] : memref<8x8xbf16, #tpu.memory_space<vmem>>, vector<8x8xbf16>
    %cst_11 = arith.constant dense<0.000000e+00> : vector<8x8xf32>
    %25 = tpu.matmul %23, %24, %cst_11 {dimension_numbers = #tpu.dot_dimension_numbers<[1], [0], [0], [1], [0, 0, 1, 1], [], []>} : vector<8x8xbf16>, vector<8x8xbf16>, vector<8x8xf32> -> vector<8x8xf32>
    %c0_12 = arith.constant 0 : index
    %c0_13 = arith.constant 0 : index
    %c0_14 = arith.constant 0 : index
    %26 = vector.load %arg6[%c0_12, %c0_13, %c0_14] : memref<1x8x8xf32, #tpu.memory_space<vmem>>, vector<1x8x8xf32>
    %27 = vector.shape_cast %26 : vector<1x8x8xf32> to vector<8x8xf32>
    %28 = vector.shape_cast %25 : vector<8x8xf32> to vector<1x8x8xf32>
    tpu.vector_store %arg6[%c0_12, %c0_13, %c0_14], %28 {strides = array<i32>} : memref<1x8x8xf32, #tpu.memory_space<vmem>>, vector<1x8x8xf32>,
    return
  }
  func.func @transform_0(%arg0: i32, %arg1: i32) -> (i32, i32, i32) {
    %c0_i32 = arith.constant 0 : i32
    %c0_i32_0 = arith.constant 0 : i32
    %c0_i32_1 = arith.constant 0 : i32
    return %arg0, %c0_i32, %c0_i32_0 : i32, i32, i32
  }
  func.func @transform_1(%arg0: i32, %arg1: i32) -> (i32, i32) {
    %c0_i32 = arith.constant 0 : i32
    %c0_i32_0 = arith.constant 0 : i32
    %c0_i32_1 = arith.constant 0 : i32
    return %c0_i32, %c0_i32_0 : i32, i32
  }
  func.func @transform_2(%arg0: i32, %arg1: i32) -> (i32, i32) {
    %c0_i32 = arith.constant 0 : i32
    %c0_i32_0 = arith.constant 0 : i32
    %c0_i32_1 = arith.constant 0 : i32
    return %c0_i32, %c0_i32_0 : i32, i32
  }
  func.func @transform_3(%arg0: i32, %arg1: i32) -> (i32, i32) {
    %c0_i32 = arith.constant 0 : i32
    %c0_i32_0 = arith.constant 0 : i32
    %c0_i32_1 = arith.constant 0 : i32
    return %c0_i32, %c0_i32_0 : i32, i32
  }
  func.func @transform_4(%arg0: i32, %arg1: i32) -> (i32, i32, i32) {
    %c0_i32 = arith.constant 0 : i32
    %c0_i32_0 = arith.constant 0 : i32
    return %arg0, %arg1, %c0_i32 : i32, i32, i32
  }
}

</mosaic_0001>

<llo_original>
// kernel: tpu_custom_call.1
$region0: #{tpu_custom_call.1}
  #allocation0 [shape = 'u32[]', space=smem, size = 0x4, offset = 0x4, fixed_abs, tag = 'smem constant byte address 0x4 - core index']
  #allocation1 [shape = 'u32[144,128]{1,0:T(1,128)}', space=vmem, size = 0x12000, scoped, tag = 'internal scratch']
  #allocation2 [shape = 'bf16[8,8]{1,0:T(8,128)(2,1)}', space=vmem, size = 0x800, scoped, tag = 'scratch operand']
  #allocation3 [shape = 'bf16[8,8]{1,0:T(8,128)(2,1)}', space=vmem, size = 0x800, scoped, tag = 'scratch operand']
  %s0 = inlined_call_operand.vmem [shape: bf16[2,8,32], index: 0, kind: input, shape index: {}]
  %s1 = inlined_call_operand.vmem [shape: bf16[32,8], index: 1, kind: input, shape index: {}]
  %s2 = inlined_call_operand.vmem [shape: bf16[32,8], index: 2, kind: input, shape index: {}]
  %s3 = inlined_call_operand.vmem [shape: bf16[32,8], index: 3, kind: input, shape index: {}]
  %s4 = inlined_call_operand.hbm [shape: f32[2,8,8], index: 4, kind: output, shape index: {}]
  %s5 = sld [smem:[#allocation0]]
  $region53: #{tpu_custom_call.1} parent=0
    _
  %s7 = ssub.s32 1, %s5
  %s8 = scalar_select 0, %s7, %s5
  $region1: #{tpu_custom_call.1} parent=0
    #allocation4 [shape = 'u8[8192]{0}', space=vmem, size = 0x2000, scoped, tag = 'output window, operand 0']
    #allocation5 [shape = 's32[2]{0}', space=sflag, size = 0x8, scoped, tag = 'scoped memory for tpu_custom_call.1']
    %9 = vsyncpa [#allocation5], 0
    %s10 = scalar_lea.sflag [#allocation5], 1
    %11 = vsyncpa %s10, 0
    loop: start=0, step=1, limit=4
    $region2: #{tpu_custom_call.1} parent=1 // loop_pre_header
      _
    $region3: #{tpu_custom_call.1} parent=1 // loop_header
      %s13 = sphi 0, %s17
      %p14 = scmp.ge.s32.totalorder %s13, 4
      %s20 = sphi 0, %s32
      %s21 = sphi 0, %s28
      %s22 = sphi 0, %s20
      %s23 = sphi 0, %s21
      %s24 = sphi 0, %s22
      %s25 = sphi 0, %s23
      %s35 = sphi 0, %s37
      %s38 = sphi 0, %s35
      %s39 = sphi 0, %s38
      %s55 = sphi 0, %s39
      %s59 = sphi 0, %s59
      %s61 = sphi 0, %s59
      %s62 = sphi 0, %s61
      %s76 = sphi 0, %s62
      %s80 = sphi 0, %s80
      %s82 = sphi 0, %s80
      %s83 = sphi 0, %s82
      %s97 = sphi 0, %s83
      %s101 = sphi 0, %s101
      %s103 = sphi 0, %s101
      %s104 = sphi 0, %s103
      %s118 = sphi 0, %s104
      %s126 = sphi 0, %s128
      %s129 = sphi 0, %s126
      %s130 = sphi 0, %s129
      %s146 = sphi 0, %s130
    $region4: #{tpu_custom_call.1} parent=1 // loop_header_branch
      %16 = sbr.rel (%p14) target = $region8
    $region5: #{tpu_custom_call.1} parent=1 // loop_body
      %s18 = ssub.s32 %s13, 1
      %s19 = ssub.s32 %s13, 2
      %s26 = sadd.s32 1, %s21
      %p27 = scmp.ge.s32.totalorder %s26, 1
      %s28 = scalar_select %p27, 0, %s26
      %s29 = sadd.s32 1, %s20
      %s30 = scalar_select %p27, %s29, %s20
      %p31 = scmp.ge.s32.totalorder %s30, 2
      %s32 = scalar_select %p31, 0, %s30
      %s33 = ssub.s32 %s20, %s32
      %p34 = scmp.eq.s32.totalorder %s33, 0
      %s36 = sadd.s32 %s35, 1
      %s37 = scalar_select %p34, %s35, %s36
      %p40 = pneg %p34
      %p41 = scmp.eq.s32.totalorder %s13, 1
      %p42 = por %p40, %p41
      %p43 = scmp.ne.s32.totalorder %s35, %s38
      %p44 = scmp.eq.s32.totalorder %s13, 0
      %p45 = por %p43, %p44
      %p46 = scmp.ne.s32.totalorder %s35, %s38
      %p47 = scmp.eq.s32.totalorder %s18, 1
      %p48 = por %p46, %p47
      %p49 = scmp.ne.s32.totalorder %s38, %s39
      %p50 = scmp.eq.s32.totalorder %s18, 0
      %p51 = por %p49, %p50
      %p52 = scmp.ne.s32.totalorder %s38, %s39
      %p53 = scmp.eq.s32.totalorder %s19, 1
      %p54 = por %p52, %p53
      %p56 = scmp.ne.s32.totalorder %s39, %s55
      %p57 = scmp.eq.s32.totalorder %s19, 0
      %p58 = por %p56, %p57
      %s60 = sadd.s32 %s59, 1
      %p63 = scmp.eq.s32.totalorder %s13, 1
      %p64 = scmp.ne.s32.totalorder %s59, %s61
      %p65 = scmp.eq.s32.totalorder %s13, 0
      %p66 = por %p64, %p65
      %p67 = scmp.ne.s32.totalorder %s59, %s61
      %p68 = scmp.eq.s32.totalorder %s18, 1
      %p69 = por %p67, %p68
      %p70 = scmp.ne.s32.totalorder %s61, %s62
      %p71 = scmp.eq.s32.totalorder %s18, 0
      %p72 = por %p70, %p71
      %p73 = scmp.ne.s32.totalorder %s61, %s62
      %p74 = scmp.eq.s32.totalorder %s19, 1
      %p75 = por %p73, %p74
      %p77 = scmp.ne.s32.totalorder %s62, %s76
      %p78 = scmp.eq.s32.totalorder %s19, 0
      %p79 = por %p77, %p78
      %s81 = sadd.s32 %s80, 1
      %p84 = scmp.eq.s32.totalorder %s13, 1
      %p85 = scmp.ne.s32.totalorder %s80, %s82
      %p86 = scmp.eq.s32.totalorder %s13, 0
      %p87 = por %p85, %p86
      %p88 = scmp.ne.s32.totalorder %s80, %s82
      %p89 = scmp.eq.s32.totalorder %s18, 1
      %p90 = por %p88, %p89
      %p91 = scmp.ne.s32.totalorder %s82, %s83
      %p92 = scmp.eq.s32.totalorder %s18, 0
      %p93 = por %p91, %p92
      %p94 = scmp.ne.s32.totalorder %s82, %s83
      %p95 = scmp.eq.s32.totalorder %s19, 1
      %p96 = por %p94, %p95
      %p98 = scmp.ne.s32.totalorder %s83, %s97
      %p99 = scmp.eq.s32.totalorder %s19, 0
      %p100 = por %p98, %p99
      %s102 = sadd.s32 %s101, 1
      %p105 = scmp.eq.s32.totalorder %s13, 1
      %p106 = scmp.ne.s32.totalorder %s101, %s103
      %p107 = scmp.eq.s32.totalorder %s13, 0
      %p108 = por %p106, %p107
      %p109 = scmp.ne.s32.totalorder %s101, %s103
      %p110 = scmp.eq.s32.totalorder %s18, 1
      %p111 = por %p109, %p110
      %p112 = scmp.ne.s32.totalorder %s103, %s104
      %p113 = scmp.eq.s32.totalorder %s18, 0
      %p114 = por %p112, %p113
      %p115 = scmp.ne.s32.totalorder %s103, %s104
      %p116 = scmp.eq.s32.totalorder %s19, 1
      %p117 = por %p115, %p116
      %p119 = scmp.ne.s32.totalorder %s104, %s118
      %p120 = scmp.eq.s32.totalorder %s19, 0
      %p121 = por %p119, %p120
      %s122 = ssub.s32 %s20, %s32
      %s123 = ssub.s32 %s21, %s28
      %s124 = sor.u32 %s122, %s123
      %p125 = scmp.eq.s32.totalorder %s124, 0
      %s127 = sadd.s32 %s126, 1
      %s128 = scalar_select %p125, %s126, %s127
      %p131 = pneg %p125
      %p132 = scmp.eq.s32.totalorder %s13, 1
      %p133 = por %p131, %p132
      %p134 = scmp.ne.s32.totalorder %s126, %s129
      %p135 = scmp.eq.s32.totalorder %s13, 0
      %p136 = por %p134, %p135
      %p137 = scmp.ne.s32.totalorder %s126, %s129
      %p138 = scmp.eq.s32.totalorder %s18, 1
      %p139 = por %p137, %p138
      %p140 = scmp.ne.s32.totalorder %s129, %s130
      %p141 = scmp.eq.s32.totalorder %s18, 0
      %p142 = por %p140, %p141
      %p143 = scmp.ne.s32.totalorder %s129, %s130
      %p144 = scmp.eq.s32.totalorder %s19, 1
      %p145 = por %p143, %p144
      %p147 = scmp.ne.s32.totalorder %s130, %s146
      %p148 = scmp.eq.s32.totalorder %s19, 0
      %p149 = por %p147, %p148
      %p150 = scmp.le.s32.totalorder 1, %s13
      %p151 = scmp.lt.s32.totalorder %s13, 3
      %p152 = pnand %p150, %p151
      %p153 = pneg %p152
      // Predicated region
      $region9: #{tpu_custom_call.1} parent=5 // pred_check
        _
      $region10: #{tpu_custom_call.1} parent=5 // pred_check_branch
        %155 = sbr.rel (%p152) target = $region12
      $region11: #{tpu_custom_call.1} parent=5 // pred_region
        %s156 = ssub.s32 %s13, 1
        // Predicated region
        $region13: #{tpu_custom_call.1} parent=11 // pred_check
          %p157 = pneg %p72
        $region14: #{tpu_custom_call.1} parent=11 // pred_check_branch
          %159 = sbr.rel (%p157) target = $region16
        $region15: #{tpu_custom_call.1} parent=11 // pred_region
          _
        $region16: #{tpu_custom_call.1} parent=11 // pred_fallthru
          _
        // Predicated region
        $region17: #{tpu_custom_call.1} parent=11 // pred_check
          %p160 = pneg %p93
        $region18: #{tpu_custom_call.1} parent=11 // pred_check_branch
          %162 = sbr.rel (%p160) target = $region20
        $region19: #{tpu_custom_call.1} parent=11 // pred_region
          _
        $region20: #{tpu_custom_call.1} parent=11 // pred_fallthru
          _
        // Predicated region
        $region21: #{tpu_custom_call.1} parent=11 // pred_check
          %p163 = pneg %p114
        $region22: #{tpu_custom_call.1} parent=11 // pred_check_branch
          %165 = sbr.rel (%p163) target = $region24
        $region23: #{tpu_custom_call.1} parent=11 // pred_region
          _
        $region24: #{tpu_custom_call.1} parent=11 // pred_fallthru
          _
      $region12: #{tpu_custom_call.1} parent=5 // pred_fallthru
        _
      %p166 = scmp.lt.s32.totalorder %s13, 2
      // Predicated region
      $region25: #{tpu_custom_call.1} parent=5 // pred_check
        %p167 = pneg %p166
      $region26: #{tpu_custom_call.1} parent=5 // pred_check_branch
        %169 = sbr.rel (%p167) target = $region28
      $region27: #{tpu_custom_call.1} parent=5 // pred_region
        // Predicated region
        $region29: #{tpu_custom_call.1} parent=27 // pred_check
          %p170 = pneg %p45
        $region30: #{tpu_custom_call.1} parent=27 // pred_check_branch
          %172 = sbr.rel (%p170) target = $region32
        $region31: #{tpu_custom_call.1} parent=27 // pred_region
          %p173 = scmp.lt.s32.totalorder %s20, 1
          %s174 = scalar_select %p173, %s20, 1
          %s175 = smul.addr %s174, 4
          %s176 = scalar_lea.vmem %s0, %s175
        $region32: #{tpu_custom_call.1} parent=27 // pred_fallthru
          _
      $region28: #{tpu_custom_call.1} parent=5 // pred_fallthru
        _
      %p177 = scmp.le.s32.totalorder 1, %s13
      %p178 = scmp.lt.s32.totalorder %s13, 3
      %p179 = pnand %p177, %p178
      %p180 = pneg %p179
      // Predicated region
      $region33: #{tpu_custom_call.1} parent=5 // pred_check
        _
      $region34: #{tpu_custom_call.1} parent=5 // pred_check_branch
        %182 = sbr.rel (%p179) target = $region36
      $region35: #{tpu_custom_call.1} parent=5 // pred_region
        %s183 = ssub.s32 %s13, 1
        %p184 = scmp.lt.s32.totalorder %s22, 1
        %s185 = scalar_select %p184, %s22, 1
        %s186 = smul.addr %s185, 4
        %s187 = scalar_lea.vmem %s0, %s186
        %p188 = pneg %p51
        %p189 = pneg %p48
        %p190 = pneg %p72
        %p191 = pneg %p69
        %p192 = pneg %p93
        %p193 = pneg %p90
        %p194 = pneg %p114
        %p195 = pneg %p111
        %p196 = pneg %p142
        %p197 = pneg %p139
        %s198 = sand.u32 %s129, 1
        %s199 = scalar_lea.sflag [#allocation5], %s198
        %s200 = sand.u32 %s129, 1
        %s201 = smul.addr %s200, 8
        %s202 = scalar_lea.vmem [#allocation4], %s201
        %p203 = scmp.lt.s32.totalorder %s22, 1
        %s204 = scalar_select %p203, %s22, 1
        %s205 = smul.addr %s204, 4
        %s206 = scalar_lea.vmem %s0, %s205
        %p208 = scmp.eq.s32.totalorder %s23, 0
        // Predicated region
        $region37: #{tpu_custom_call.1} parent=35 // pred_check
          %p209 = pneg %p208
        $region38: #{tpu_custom_call.1} parent=35 // pred_check_branch
          %211 = sbr.rel (%p209) target = $region40
        $region39: #{tpu_custom_call.1} parent=35 // pred_region
          %v212 = vld [vmem:[%s206] sm:$0xf]
          %v213 = vld [vmem:[%s2] sm:$0xf]
          %v214 = vld [vmem:[%s2 + $0x4] sm:$0xf]
          %v215 = vld [vmem:[%s2 + $0x8] sm:$0xf]
          %v216 = vld [vmem:[%s2 + $0xc] sm:$0xf]
          %v221 = vunpack.c.l.b16 %v213
          %v222 = vunpack.c.l.b16 %v214
          %v223 = vunpack.c.l.b16 %v215
          %v224 = vunpack.c.l.b16 %v216
          %v225 = vpack.c.b16 %v222, %v221
          %v226 = vpack.c.b16 %v224, %v223
          %vm229 = vcmask 261120
          %v231 = vsel %vm229, %v212, 0
          %233 = vmatprep.subr.bf16.mxu0 0
          %234 = vmatpush1.bf16.msra.mxu0 %v225
          %235 = vmatprep.subr.bf16.mxu0 0
          %236 = vmatpush1.bf16.msra.mxu0 %v226
          %237 = vmatprep.subr.bf16.mxu0 0
          %238 = vmatpush1.bf16.msra.mxu0 0
          %239 = vmatprep.subr.bf16.mxu0 0
          %240 = vmatpush1.bf16.msra.mxu0 0
          %241 = vmatprep.subr.bf16.mxu0 0
          %242 = vmatpush1.bf16.msra.mxu0 0
          %243 = vmatprep.subr.bf16.mxu0 0
          %244 = vmatpush1.bf16.msra.mxu0 0
          %245 = vmatprep.subr.bf16.mxu0 0
          %246 = vmatpush1.bf16.msra.mxu0 0
          %247 = vmatprep.subr.bf16.mxu0 0
          %248 = vmatpush1.bf16.msra.mxu0 0
          %249 = vmatprep.subr.bf16.mxu0 0
          %250 = vmatpush1.bf16.msra.mxu0 0
          %251 = vmatprep.subr.bf16.mxu0 0
          %252 = vmatpush1.bf16.msra.mxu0 0
          %253 = vmatprep.subr.bf16.mxu0 0
          %254 = vmatpush1.bf16.msra.mxu0 0
          %255 = vmatprep.subr.bf16.mxu0 0
          %256 = vmatpush1.bf16.msra.mxu0 0
          %257 = vmatprep.subr.bf16.mxu0 0
          %258 = vmatpush1.bf16.msra.mxu0 0
          %259 = vmatprep.subr.bf16.mxu0 0
          %260 = vmatpush1.bf16.msra.mxu0 0
          %261 = vmatprep.subr.bf16.mxu0 0
          %262 = vmatpush1.bf16.msra.mxu0 0
          %263 = vmatprep.subr.bf16.mxu0 0
          %264 = vmatpush1.bf16.msra.mxu0 0
          %265 = vmatprep.mubr.bf16.mxu0 0
          %266 = vmatmul.mubr.bf16.gmra.mrb[0].mxu0 %v231
          %v267 = vpop.f32.mrb[0].mxu0
          %v268 = vadd.f32 0.0, %v267
          %v269 = vpop.f32.mrb[0].mxu0
          %v270 = vpop.f32.mrb[0].mxu0
          %v271 = vpop.f32.mrb[0].mxu0
          %272 = vdwg.mxu0
          %v273 = vpack.c.bf16 %v268, %v268
          %vm274 = vcmask 60416
          %275 = vst.msk [vmem:[#allocation2] sm:$0xf] %vm274, %v273
          %v276 = vld [vmem:[%s3] sm:$0xf]
          %v277 = vld [vmem:[%s3 + $0x4] sm:$0xf]
          %v278 = vld [vmem:[%s3 + $0x8] sm:$0xf]
          %v279 = vld [vmem:[%s3 + $0xc] sm:$0xf]
          %v284 = vunpack.c.l.b16 %v276
          %v285 = vunpack.c.l.b16 %v277
          %v286 = vunpack.c.l.b16 %v278
          %v287 = vunpack.c.l.b16 %v279
          %v288 = vpack.c.b16 %v285, %v284
          %v289 = vpack.c.b16 %v287, %v286
          %292 = vmatprep.subr.bf16.mxu0 0
          %293 = vmatpush1.bf16.msra.mxu0 %v288
          %294 = vmatprep.subr.bf16.mxu0 0
          %295 = vmatpush1.bf16.msra.mxu0 %v289
          %296 = vmatprep.subr.bf16.mxu0 0
          %297 = vmatpush1.bf16.msra.mxu0 0
          %298 = vmatprep.subr.bf16.mxu0 0
          %299 = vmatpush1.bf16.msra.mxu0 0
          %300 = vmatprep.subr.bf16.mxu0 0
          %301 = vmatpush1.bf16.msra.mxu0 0
          %302 = vmatprep.subr.bf16.mxu0 0
          %303 = vmatpush1.bf16.msra.mxu0 0
          %304 = vmatprep.subr.bf16.mxu0 0
          %305 = vmatpush1.bf16.msra.mxu0 0
          %306 = vmatprep.subr.bf16.mxu0 0
          %307 = vmatpush1.bf16.msra.mxu0 0
          %308 = vmatprep.subr.bf16.mxu0 0
          %309 = vmatpush1.bf16.msra.mxu0 0
          %310 = vmatprep.subr.bf16.mxu0 0
          %311 = vmatpush1.bf16.msra.mxu0 0
          %312 = vmatprep.subr.bf16.mxu0 0
          %313 = vmatpush1.bf16.msra.mxu0 0
          %314 = vmatprep.subr.bf16.mxu0 0
          %315 = vmatpush1.bf16.msra.mxu0 0
          %316 = vmatprep.subr.bf16.mxu0 0
          %317 = vmatpush1.bf16.msra.mxu0 0
          %318 = vmatprep.subr.bf16.mxu0 0
          %319 = vmatpush1.bf16.msra.mxu0 0
          %320 = vmatprep.subr.bf16.mxu0 0
          %321 = vmatpush1.bf16.msra.mxu0 0
          %322 = vmatprep.subr.bf16.mxu0 0
          %323 = vmatpush1.bf16.msra.mxu0 0
          %324 = vmatprep.mubr.bf16.mxu0 0
          %325 = vmatmul.mubr.bf16.gmra.mrb[0].mxu0 %v231
          %v326 = vpop.f32.mrb[0].mxu0
          %v327 = vadd.f32 0.0, %v326
          %v328 = vpop.f32.mrb[0].mxu0
          %v329 = vpop.f32.mrb[0].mxu0
          %v330 = vpop.f32.mrb[0].mxu0
          %331 = vdwg.mxu0
          %v332 = vpack.c.bf16 %v327, %v327
          %333 = vst.msk [vmem:[#allocation3] sm:$0xf] %vm274, %v332
        $region40: #{tpu_custom_call.1} parent=35 // pred_fallthru
          _
        %s334 = smul.u32 %s23, 8
        %s335 = sshra.s32 %s334, 3
        %s336 = sand.u32 %s334, 7
        %s337 = smul.addr %s335, 4
        %s338 = scalar_lea.vmem %s206, %s337
        %v339 = vld [vmem:[%s338] sm:$0xf]
        %v340 = vld [vmem:[%s1] sm:$0xf]
        %v341 = vld [vmem:[%s1 + $0x4] sm:$0xf]
        %v342 = vld [vmem:[%s1 + $0x8] sm:$0xf]
        %v343 = vld [vmem:[%s1 + $0xc] sm:$0xf]
        %v348 = vunpack.c.l.b16 %v340
        %v349 = vunpack.c.l.b16 %v341
        %v350 = vunpack.c.l.b16 %v342
        %v351 = vunpack.c.l.b16 %v343
        %v352 = vpack.c.b16 %v349, %v348
        %v353 = vpack.c.b16 %v351, %v350
        %vm356 = vcmask 261120
        %v358 = vsel %vm356, %v339, 0
        %360 = vmatprep.subr.bf16.mxu0 0
        %361 = vmatpush1.bf16.msra.mxu0 %v352
        %362 = vmatprep.subr.bf16.mxu0 0
        %363 = vmatpush1.bf16.msra.mxu0 %v353
        %364 = vmatprep.subr.bf16.mxu0 0
        %365 = vmatpush1.bf16.msra.mxu0 0
        %366 = vmatprep.subr.bf16.mxu0 0
        %367 = vmatpush1.bf16.msra.mxu0 0
        %368 = vmatprep.subr.bf16.mxu0 0
        %369 = vmatpush1.bf16.msra.mxu0 0
        %370 = vmatprep.subr.bf16.mxu0 0
        %371 = vmatpush1.bf16.msra.mxu0 0
        %372 = vmatprep.subr.bf16.mxu0 0
        %373 = vmatpush1.bf16.msra.mxu0 0
        %374 = vmatprep.subr.bf16.mxu0 0
        %375 = vmatpush1.bf16.msra.mxu0 0
        %376 = vmatprep.subr.bf16.mxu0 0
        %377 = vmatpush1.bf16.msra.mxu0 0
        %378 = vmatprep.subr.bf16.mxu0 0
        %379 = vmatpush1.bf16.msra.mxu0 0
        %380 = vmatprep.subr.bf16.mxu0 0
        %381 = vmatpush1.bf16.msra.mxu0 0
        %382 = vmatprep.subr.bf16.mxu0 0
        %383 = vmatpush1.bf16.msra.mxu0 0
        %384 = vmatprep.subr.bf16.mxu0 0
        %385 = vmatpush1.bf16.msra.mxu0 0
        %386 = vmatprep.subr.bf16.mxu0 0
        %387 = vmatpush1.bf16.msra.mxu0 0
        %388 = vmatprep.subr.bf16.mxu0 0
        %389 = vmatpush1.bf16.msra.mxu0 0
        %390 = vmatprep.subr.bf16.mxu0 0
        %391 = vmatpush1.bf16.msra.mxu0 0
        %392 = vmatprep.mubr.bf16.mxu0 0
        %393 = vmatmul.mubr.bf16.gmra.mrb[0].mxu0 %v358
        %v394 = vpop.f32.mrb[0].mxu0
        %v395 = vadd.f32 0.0, %v394
        %v396 = vpop.f32.mrb[0].mxu0
        %v397 = vpop.f32.mrb[0].mxu0
        %v398 = vpop.f32.mrb[0].mxu0
        %399 = vdwg.mxu0
        %v400 = vpack.c.bf16 %v395, %v395
        %v401 = vld [vmem:[#allocation2] sm:$0xf]
        %vm402 = vcmask 64512
        %v404 = vsel %vm402, %v400, 0
        %v407 = vsel %vm402, %v401, 0
        %409 = vmatprep.subr.bf16.mxu0 0
        %410 = vmatpush1.bf16.xpose.msra.mxu0 %v407
        %411 = vmatprep.subr.bf16.mxu0 0
        %412 = vmatpush1.bf16.xpose.msra.mxu0 0
        %413 = vmatprep.subr.bf16.mxu0 0
        %414 = vmatpush1.bf16.xpose.msra.mxu0 0
        %415 = vmatprep.subr.bf16.mxu0 0
        %416 = vmatpush1.bf16.xpose.msra.mxu0 0
        %417 = vmatprep.subr.bf16.mxu0 0
        %418 = vmatpush1.bf16.xpose.msra.mxu0 0
        %419 = vmatprep.subr.bf16.mxu0 0
        %420 = vmatpush1.bf16.xpose.msra.mxu0 0
        %421 = vmatprep.subr.bf16.mxu0 0
        %422 = vmatpush1.bf16.xpose.msra.mxu0 0
        %423 = vmatprep.subr.bf16.mxu0 0
        %424 = vmatpush1.bf16.xpose.msra.mxu0 0
        %425 = vmatprep.subr.bf16.mxu0 0
        %426 = vmatpush1.bf16.xpose.msra.mxu0 0
        %427 = vmatprep.subr.bf16.mxu0 0
        %428 = vmatpush1.bf16.xpose.msra.mxu0 0
        %429 = vmatprep.subr.bf16.mxu0 0
        %430 = vmatpush1.bf16.xpose.msra.mxu0 0
        %431 = vmatprep.subr.bf16.mxu0 0
        %432 = vmatpush1.bf16.xpose.msra.mxu0 0
        %433 = vmatprep.subr.bf16.mxu0 0
        %434 = vmatpush1.bf16.xpose.msra.mxu0 0
        %435 = vmatprep.subr.bf16.mxu0 0
        %436 = vmatpush1.bf16.xpose.msra.mxu0 0
        %437 = vmatprep.subr.bf16.mxu0 0
        %438 = vmatpush1.bf16.xpose.msra.mxu0 0
        %439 = vmatprep.subr.bf16.mxu0 0
        %440 = vmatpush1.bf16.xpose.msra.mxu0 0
        %441 = vmatprep.mubr.bf16.mxu0 0
        %442 = vmatmul.mubr.bf16.gmra.mrb[0].mxu0 %v404
        %v443 = vpop.f32.mrb[0].mxu0
        %v444 = vadd.f32 0.0, %v443
        %v445 = vpop.f32.mrb[0].mxu0
        %v446 = vpop.f32.mrb[0].mxu0
        %v447 = vpop.f32.mrb[0].mxu0
        %448 = vdwg.mxu0
        %v449 = vsel %vm402, %v444, -inf
        %450 = vmax.xlane.f32.xlu0 %v449
        %v451 = vpop.xlane.xlu0 %450
        %v452 = vsub.f32 %v444, %v451
        %v453 = vmul.f32 %v452, 1.442695
        %v454 = vpow.pop %v453
        %v455 = vsel %vm402, %v454, 0.0
        %456 = vadd.xlane.f32.xlu0 %v455
        %v457 = vpop.xlane.xlu0 %456
        %v458 = vrcp.pop %v457
        %v459 = vmul.f32 %v454, %v458
        %v460 = vpack.c.bf16 %v459, %v459
        %v461 = vld [vmem:[#allocation3] sm:$0xf]
        %v463 = vsel %vm402, %v460, 0
        %vm465 = vcmask 1043456
        %v467 = vsel %vm465, %v461, 0
        %469 = vmatprep.subr.bf16.mxu0 0
        %470 = vmatpush1.bf16.msra.mxu0 %v467
        %471 = vmatprep.subr.bf16.mxu0 0
        %472 = vmatpush1.bf16.msra.mxu0 0
        %473 = vmatprep.subr.bf16.mxu0 0
        %474 = vmatpush1.bf16.msra.mxu0 0
        %475 = vmatprep.subr.bf16.mxu0 0
        %476 = vmatpush1.bf16.msra.mxu0 0
        %477 = vmatprep.subr.bf16.mxu0 0
        %478 = vmatpush1.bf16.msra.mxu0 0
        %479 = vmatprep.subr.bf16.mxu0 0
        %480 = vmatpush1.bf16.msra.mxu0 0
        %481 = vmatprep.subr.bf16.mxu0 0
        %482 = vmatpush1.bf16.msra.mxu0 0
        %483 = vmatprep.subr.bf16.mxu0 0
        %484 = vmatpush1.bf16.msra.mxu0 0
        %485 = vmatprep.subr.bf16.mxu0 0
        %486 = vmatpush1.bf16.msra.mxu0 0
        %487 = vmatprep.subr.bf16.mxu0 0
        %488 = vmatpush1.bf16.msra.mxu0 0
        %489 = vmatprep.subr.bf16.mxu0 0
        %490 = vmatpush1.bf16.msra.mxu0 0
        %491 = vmatprep.subr.bf16.mxu0 0
        %492 = vmatpush1.bf16.msra.mxu0 0
        %493 = vmatprep.subr.bf16.mxu0 0
        %494 = vmatpush1.bf16.msra.mxu0 0
        %495 = vmatprep.subr.bf16.mxu0 0
        %496 = vmatpush1.bf16.msra.mxu0 0
        %497 = vmatprep.subr.bf16.mxu0 0
        %498 = vmatpush1.bf16.msra.mxu0 0
        %499 = vmatprep.subr.bf16.mxu0 0
        %500 = vmatpush1.bf16.msra.mxu0 0
        %501 = vmatprep.mubr.bf16.mxu0 0
        %502 = vmatmul.mubr.bf16.gmra.mrb[0].mxu0 %v463
        %v503 = vpop.f32.mrb[0].mxu0
        %v504 = vadd.f32 0.0, %v503
        %v505 = vpop.f32.mrb[0].mxu0
        %v506 = vpop.f32.mrb[0].mxu0
        %v507 = vpop.f32.mrb[0].mxu0
        %508 = vdwg.mxu0
        %509 = vst.msk [vmem:[%s202] sm:$0xff] %vm402, %v504
        %s510 = sand.u32 %s129, 1
        %s511 = scalar_lea.sflag [#allocation5], %s510
        %s512 = sand.u32 %s129, 1
        %s513 = smul.addr %s512, 8
        %s514 = scalar_lea.vmem [#allocation4], %s513
        // Predicated region
        $region41: #{tpu_custom_call.1} parent=35 // pred_check
          %p515 = pneg %p139
        $region42: #{tpu_custom_call.1} parent=35 // pred_check_branch
          %517 = sbr.rel (%p515) target = $region44
        $region43: #{tpu_custom_call.1} parent=35 // pred_region
          %s519 = ssub.s32 128, 128
          %520 = vsyncadd %s511, %s519
          %s521 = sadd.s32 %s23, %s22
          %s522 = smul.addr %s521, 128
          %s523 = scalar_lea.hbm %s4, %s522
          %s525 = sshll.u32 %s514, 4
          %s526 = int_to_ptr.vmem [resolvable:$true] %s525
          %528 = dma.vmem_to_hbm [thread:$0]  %s526, 128, %s523, %s511
        $region44: #{tpu_custom_call.1} parent=35 // pred_fallthru
          _
      $region36: #{tpu_custom_call.1} parent=5 // pred_fallthru
        _
      %p529 = scmp.le.s32.totalorder 2, %s13
      // Predicated region
      $region45: #{tpu_custom_call.1} parent=5 // pred_check
        %p530 = pneg %p529
      $region46: #{tpu_custom_call.1} parent=5 // pred_check_branch
        %532 = sbr.rel (%p530) target = $region48
      $region47: #{tpu_custom_call.1} parent=5 // pred_region
        %s533 = ssub.s32 %s13, 2
        // Predicated region
        $region49: #{tpu_custom_call.1} parent=47 // pred_check
          %p534 = pneg %p145
        $region50: #{tpu_custom_call.1} parent=47 // pred_check_branch
          %536 = sbr.rel (%p534) target = $region52
        $region51: #{tpu_custom_call.1} parent=47 // pred_region
          %s537 = sand.u32 %s130, 1
          %s538 = scalar_lea.sflag [#allocation5], %s537
          %s539 = sand.u32 %s130, 1
          %s540 = smul.addr %s539, 8
          %s541 = scalar_lea.vmem [#allocation4], %s540
          %542 = dma.done %s538, 128
        $region52: #{tpu_custom_call.1} parent=47 // pred_fallthru
          _
      $region48: #{tpu_custom_call.1} parent=5 // pred_fallthru
        _
    $region6: #{tpu_custom_call.1} parent=1 // loop_footer
      %s17 = sadd.s32 1, %s13
    $region7: #{tpu_custom_call.1} parent=1 // loop_footer_branch
      %12 = sbr.rel target = $region3
    $region8: #{tpu_custom_call.1} parent=1 // loop_exit
      _
    %543 = vsyncpa [#allocation5], 1
    %s544 = scalar_lea.sflag [#allocation5], 1
    %545 = vsyncpa %s544, 1

</llo_original>
